<compile_context>
chip_gen: v5e
topology: v5e:2x2
jax: 0.10.0
libtpu: 0.0.40
codegen_flags: <defaults>
</compile_context>

<pallas_src>
import math
import jax
import jax.numpy as jnp
from jax.experimental import pallas as pl
from jax.experimental.pallas import tpu as pltpu


# MXU operand dtype (accumulation is always f32 via preferred_element_type).
MXU_DTYPE = jnp.bfloat16


def _mxu_dot(a, b):
    """MXU matmul: bf16 operands, f32 accumulate."""
    return jnp.dot(a.astype(MXU_DTYPE), b.astype(MXU_DTYPE),
                   preferred_element_type=jnp.float32)


def _ln(x, g, b, eps=1e-5):
    """LayerNorm over the last axis (all math in f32)."""
    mu = jnp.mean(x, axis=-1, keepdims=True)
    var = jnp.mean(jnp.square(x - mu), axis=-1, keepdims=True)
    return (x - mu) * jax.lax.rsqrt(var + eps) * g + b


def _gelu(y):
    # TODO(synk): HF RoBERTa uses exact erf-GELU; tanh approximation used here since
    # lax.erf is not guaranteed to lower in Mosaic (max abs error ~1e-3).
    c = math.sqrt(2.0 / math.pi)
    return 0.5 * y * (1.0 + jnp.tanh(c * (y + 0.044715 * y * y * y)))


# ----------------------------- Pallas kernels ------------------------------ #

def _layernorm_op(x, gamma, beta, *, block_rows):
    """LayerNorm(x) over the last axis (no residual). x:(M,H)."""
    M, H = x.shape

    def kernel(x_ref, g_ref, b_ref, o_ref):
        o_ref[...] = _ln(x_ref[...], g_ref[...], b_ref[...])

    return pl.pallas_call(
        kernel,
        out_shape=jax.ShapeDtypeStruct((M, H), jnp.float32),
        grid=(M // block_rows,),
        in_specs=[pl.BlockSpec((block_rows, H), lambda i: (i, 0)),
                  pl.BlockSpec((1, H), lambda i: (0, 0)),
                  pl.BlockSpec((1, H), lambda i: (0, 0))],
        out_specs=pl.BlockSpec((block_rows, H), lambda i: (i, 0)),
        compiler_params=pltpu.CompilerParams(
            dimension_semantics=("parallel",)),
    )(x, gamma.reshape(1, H), beta.reshape(1, H))


def _encoder_layer(x, mask3, lw, *, B, S, H, nH, D, I):
    """One full RoBERTa encoder layer in a single pallas_call.

    x:     (B*S, H) activations
    mask3: (B, 1, S) additive attention mask (0 / -1e9)
    lw:    dict of fused layer weights (qkv_w already has 1/sqrt(D) folded into Q).
    Grid iterates over the batch ("parallel") — each step handles one sequence.
    """

    def kernel(x_ref, m_ref,
               qkv_w_ref, qkv_b_ref, o_w_ref, o_b_ref,
               ln1_g_ref, ln1_b_ref,
               i_w_ref, i_b_ref, fo_w_ref, fo_b_ref,
               ln2_g_ref, ln2_b_ref,
               out_ref,
               qkv_sc, ctx_sc):
        xv = x_ref[...]                                              # (S, H)

        # Fused QKV projection (Q pre-scaled by 1/sqrt(D) in the weights).
        qkv_sc[...] = _mxu_dot(xv, qkv_w_ref[...]) + qkv_b_ref[...]  # (S, 3H)

        m = m_ref[0]                                                 # (1, S) additive mask

        # Per-head scaled-dot-product attention; all heads handled in this step.
        for h in range(nH):
            qh = qkv_sc[:, pl.ds(h * D, D)]                          # (S, D)
            kh = qkv_sc[:, pl.ds(H + h * D, D)]                      # (S, D)
            vh = qkv_sc[:, pl.ds(2 * H + h * D, D)]                  # (S, D)
            # q @ k^T via explicit contracting dims (no in-kernel transpose).
            s = jax.lax.dot_general(
                qh.astype(MXU_DTYPE), kh.astype(MXU_DTYPE),
                (((1,), (1,)), ((), ())),
                preferred_element_type=jnp.float32)                  # (S, S)
            s = s + m
            s = s - jnp.max(s, axis=-1, keepdims=True)
            p = jnp.exp(s)
            p = p * pl.reciprocal(jnp.sum(p, axis=-1, keepdims=True), approx=True)
            ctx_sc[:, pl.ds(h * D, D)] = _mxu_dot(p, vh)             # (S, D)

        # Output projection + residual + LayerNorm (fused epilogue).
        attn = _mxu_dot(ctx_sc[...], o_w_ref[...]) + o_b_ref[...]
        x1 = _ln(attn + xv, ln1_g_ref[...], ln1_b_ref[...])

        # FFN (GELU) + residual + LayerNorm.
        inter = _gelu(_mxu_dot(x1, i_w_ref[...]) + i_b_ref[...])
        ffn = _mxu_dot(inter, fo_w_ref[...]) + fo_b_ref[...]
        out_ref[...] = _ln(ffn + x1, ln2_g_ref[...], ln2_b_ref[...])

    return pl.pallas_call(
        kernel,
        out_shape=jax.ShapeDtypeStruct((B * S, H), jnp.float32),
        grid=(B,),
        in_specs=[
            pl.BlockSpec((S, H), lambda b: (b, 0)),        # x  (per-batch row block)
            pl.BlockSpec((1, 1, S), lambda b: (b, 0, 0)),  # additive mask (per-batch)
            pl.BlockSpec((H, 3 * H), lambda b: (0, 0)),    # qkv_w
            pl.BlockSpec((1, 3 * H), lambda b: (0, 0)),    # qkv_b
            pl.BlockSpec((H, H), lambda b: (0, 0)),        # o_w
            pl.BlockSpec((1, H), lambda b: (0, 0)),        # o_b
            pl.BlockSpec((1, H), lambda b: (0, 0)),        # attn LN gamma
            pl.BlockSpec((1, H), lambda b: (0, 0)),        # attn LN beta
            pl.BlockSpec((H, I), lambda b: (0, 0)),        # intermediate w
            pl.BlockSpec((1, I), lambda b: (0, 0)),        # intermediate b
            pl.BlockSpec((I, H), lambda b: (0, 0)),        # ffn out w
            pl.BlockSpec((1, H), lambda b: (0, 0)),        # ffn out b
            pl.BlockSpec((1, H), lambda b: (0, 0)),        # ffn LN gamma
            pl.BlockSpec((1, H), lambda b: (0, 0)),        # ffn LN beta
        ],
        out_specs=pl.BlockSpec((S, H), lambda b: (b, 0)),
        scratch_shapes=[pltpu.VMEM((S, 3 * H), jnp.float32),   # fused QKV
                        pltpu.VMEM((S, H), jnp.float32)],      # attention context
        compiler_params=pltpu.CompilerParams(
            dimension_semantics=("parallel",),        # 2 TCs on v7x split the batch
            vmem_limit_bytes=32 * 1024 * 1024),       # explicit, safe on v5e/v6e/v7x
    )(x, mask3, lw["qkv_w"], lw["qkv_b"], lw["o_w"], lw["o_b"],
      lw["ln1_g"], lw["ln1_b"], lw["i_w"], lw["i_b"],
      lw["fo_w"], lw["fo_b"], lw["ln2_g"], lw["ln2_b"])


def _classifier_head(pooled, dense_w, dense_b, out_w, out_b):
    """RobertaClassificationHead: tanh(dense(x)) -> out_proj, fused in one call."""
    Bsz, H = pooled.shape
    NL = out_w.shape[1]

    def kernel(x_ref, dw_ref, db_ref, ow_ref, ob_ref, o_ref):
        h = jnp.tanh(_mxu_dot(x_ref[...], dw_ref[...]) + db_ref[...])
        o_ref[...] = _mxu_dot(h, ow_ref[...]) + ob_ref[...]

    return pl.pallas_call(
        kernel,
        out_shape=jax.ShapeDtypeStruct((Bsz, NL), jnp.float32),
        grid=(1,),
        in_specs=[pl.BlockSpec((Bsz, H), lambda i: (0, 0)),
                  pl.BlockSpec((H, H), lambda i: (0, 0)),
                  pl.BlockSpec((1, H), lambda i: (0, 0)),
                  pl.BlockSpec((H, NL), lambda i: (0, 0)),
                  pl.BlockSpec((1, NL), lambda i: (0, 0))],
        out_specs=pl.BlockSpec((Bsz, NL), lambda i: (0, 0)),
    )(pooled, dense_w, dense_b.reshape(1, H), out_w, out_b.reshape(1, NL))


# --------------------------- parameters (synthetic) ------------------------- #

def init_params(key, cfg):
    H, I = cfg["hidden"], cfg["intermediate"]
    V, P = cfg["vocab"], cfg["max_pos"]
    L, NL = cfg["layers"], cfg["num_labels"]
    keys = iter(jax.random.split(key, 256))
    std = 0.02

    def w(shape):
        return jax.random.normal(next(keys), shape, jnp.float32) * std

    params = {
        "word_emb": w((V, H)),
        "pos_emb": w((P, H)),
        "type_emb": w((1, H)),                     # type_vocab_size = 1 in RoBERTa
        "emb_ln_g": jnp.ones((H,), jnp.float32),
        "emb_ln_b": jnp.zeros((H,), jnp.float32),
        "layers": [],
        "cls_dense_w": w((H, H)), "cls_dense_b": jnp.zeros((H,), jnp.float32),
        "cls_out_w": w((H, NL)),  "cls_out_b":  jnp.zeros((NL,), jnp.float32),
    }
    for _ in range(L):
        params["layers"].append({
            "q_w": w((H, H)), "q_b": jnp.zeros((H,), jnp.float32),
            "k_w": w((H, H)), "k_b": jnp.zeros((H,), jnp.float32),
            "v_w": w((H, H)), "v_b": jnp.zeros((H,), jnp.float32),
            "o_w": w((H, H)), "o_b": jnp.zeros((H,), jnp.float32),
            "attn_ln_g": jnp.ones((H,), jnp.float32),
            "attn_ln_b": jnp.zeros((H,), jnp.float32),
            "i_w": w((H, I)),  "i_b":  jnp.zeros((I,), jnp.float32),
            "fo_w": w((I, H)), "fo_b": jnp.zeros((H,), jnp.float32),
            "ffn_ln_g": jnp.ones((H,), jnp.float32),
            "ffn_ln_b": jnp.zeros((H,), jnp.float32),
        })
    return params


def fuse_params(params, cfg):
    """One-time prep: concat Q|K|V weights, fold 1/sqrt(D) into Q, reshape biases."""
    H, nH, I = cfg["hidden"], cfg["heads"], cfg["intermediate"]
    D = H // nH
    scale = 1.0 / math.sqrt(D)
    fused = {k: params[k] for k in
             ("word_emb", "pos_emb", "type_emb", "emb_ln_g", "emb_ln_b",
              "cls_dense_w", "cls_dense_b", "cls_out_w", "cls_out_b")}
    fused["layers"] = []
    for lyr in params["layers"]:
        fused["layers"].append({
            "qkv_w": jnp.concatenate([lyr["q_w"] * scale, lyr["k_w"], lyr["v_w"]], axis=1),
            "qkv_b": jnp.concatenate([lyr["q_b"] * scale, lyr["k_b"], lyr["v_b"]]).reshape(1, 3 * H),
            "o_w": lyr["o_w"], "o_b": lyr["o_b"].reshape(1, H),
            "ln1_g": lyr["attn_ln_g"].reshape(1, H), "ln1_b": lyr["attn_ln_b"].reshape(1, H),
            "i_w": lyr["i_w"], "i_b": lyr["i_b"].reshape(1, I),
            "fo_w": lyr["fo_w"], "fo_b": lyr["fo_b"].reshape(1, H),
            "ln2_g": lyr["ffn_ln_g"].reshape(1, H), "ln2_b": lyr["ffn_ln_b"].reshape(1, H),
        })
    return fused


# --------------------------------- forward ---------------------------------- #

def emotion_classifier_forward(fparams, input_ids, attention_mask=None, *, cfg):
    B, S = input_ids.shape
    H, nH, I = cfg["hidden"], cfg["heads"], cfg["intermediate"]
    D = H // nH
    pad_id = cfg["pad_token_id"]

    if attention_mask is None:
        attention_mask = jnp.ones((B, S), jnp.float32)
    attention_mask = attention_mask.astype(jnp.float32)

    # RoBERTa position ids: cumsum of non-pad tokens, offset by padding_idx.
    not_pad = (input_ids != pad_id).astype(jnp.int32)
    position_ids = jnp.cumsum(not_pad, axis=1) * not_pad + pad_id

    emb = (fparams["word_emb"][input_ids]
           + fparams["pos_emb"][position_ids]
           + fparams["type_emb"][0])                        # token_type_ids == 0
    x = emb.reshape(B * S, H).astype(jnp.float32)
    x = _layernorm_op(x, fparams["emb_ln_g"], fparams["emb_ln_b"], block_rows=S)

    # additive attention mask, (B, 1, S) — NOT replicated per head.
    mask3 = ((1.0 - attention_mask) * (-1e9)).reshape(B, 1, S).astype(jnp.float32)

    for lyr in fparams["layers"]:
        x = _encoder_layer(x, mask3, lyr, B=B, S=S, H=H, nH=nH, D=D, I=I)

    pooled = x.reshape(B, S, H)[:, 0, :]                    # <s> token (RobertaClassificationHead)
    logits = _classifier_head(pooled, fparams["cls_dense_w"], fparams["cls_dense_b"],
                              fparams["cls_out_w"], fparams["cls_out_b"])
    return logits                                           # (B, num_labels)


# ----------------------------------- main ------------------------------------ #

if __name__ == "__main__":
    cfg = dict(vocab=64, hidden=32, heads=4, intermediate=64, layers=2,
               max_pos=16, num_labels=28, pad_token_id=1)
    B, S = 2, 8

    key = jax.random.PRNGKey(0)
    input_ids = jax.random.randint(key, (B, S), 3, cfg["vocab"])
    # pad the tail of the second sequence to exercise the attention mask
    input_ids = input_ids.at[1, -2:].set(cfg["pad_token_id"])
    attention_mask = (input_ids != cfg["pad_token_id"]).astype(jnp.float32)

    params = init_params(jax.random.PRNGKey(1234), cfg)     # mirrors torch.manual_seed(1234)
    fparams = fuse_params(params, cfg)

    logits = emotion_classifier_forward(fparams, input_ids, attention_mask, cfg=cfg)
    jax.block_until_ready(logits)
    assert logits.shape == (B, cfg["num_labels"]) and logits.dtype == jnp.float32
    print("KERNEL_OK")
</pallas_src>

<mosaic_0001>
module attributes {stable_mosaic.version = 11 : i64} {
  func.func @kernel(%arg0: i32, %arg1: memref<8x32xf32, #tpu.memory_space<vmem>>, %arg2: memref<1x32xf32, #tpu.memory_space<vmem>>, %arg3: memref<1x32xf32, #tpu.memory_space<vmem>>, %arg4: memref<8x32xf32, #tpu.memory_space<vmem>>) attributes {dimension_semantics = [#tpu.dimension_semantics<parallel>], iteration_bounds = array<i64: 2>, scalar_prefetch = 0 : i64, scratch_operands = 0 : i64, tpu.core_type = #tpu.core_type<tc>, window_params = [{transform_indices = @transform_0, window_bounds = array<i64: 8, 32>}, {pipeline_mode = #tpu.pipeline_mode<synchronous>, transform_indices = @transform_1, window_bounds = array<i64: 1, 32>}, {pipeline_mode = #tpu.pipeline_mode<synchronous>, transform_indices = @transform_2, window_bounds = array<i64: 1, 32>}, {transform_indices = @transform_3, window_bounds = array<i64: 8, 32>}]} {
    %c0 = arith.constant 0 : index
    %c0_0 = arith.constant 0 : index
    %0 = vector.load %arg1[%c0, %c0_0] : memref<8x32xf32, #tpu.memory_space<vmem>>, vector<8x32xf32>
    %c0_1 = arith.constant 0 : index
    %c0_2 = arith.constant 0 : index
    %1 = vector.load %arg2[%c0_1, %c0_2] : memref<1x32xf32, #tpu.memory_space<vmem>>, vector<1x32xf32>
    %c0_3 = arith.constant 0 : index
    %c0_4 = arith.constant 0 : index
    %2 = vector.load %arg3[%c0_3, %c0_4] : memref<1x32xf32, #tpu.memory_space<vmem>>, vector<1x32xf32>
    %cst = arith.constant dense<0.000000e+00> : vector<8xf32>
    %3 = vector.multi_reduction <add>, %0, %cst [1] : vector<8x32xf32> to vector<8xf32>
    %4 = vector.shape_cast %3 : vector<8xf32> to vector<8x1xf32>
    %cst_5 = arith.constant 3.200000e+01 : f32
    %5 = vector.broadcast %cst_5 : f32 to vector<8x1xf32>
    %6 = arith.divf %4, %5 : vector<8x1xf32>
    %7 = vector.broadcast %6 : vector<8x1xf32> to vector<8x32xf32>
    %8 = arith.subf %0, %7 : vector<8x32xf32>
    %9 = arith.mulf %8, %8 : vector<8x32xf32>
    %cst_6 = arith.constant dense<0.000000e+00> : vector<8xf32>
    %10 = vector.multi_reduction <add>, %9, %cst_6 [1] : vector<8x32xf32> to vector<8xf32>
    %11 = vector.shape_cast %10 : vector<8xf32> to vector<8x1xf32>
    %cst_7 = arith.constant 3.200000e+01 : f32
    %12 = vector.broadcast %cst_7 : f32 to vector<8x1xf32>
    %13 = arith.divf %11, %12 : vector<8x1xf32>
    %14 = vector.broadcast %6 : vector<8x1xf32> to vector<8x32xf32>
    %15 = arith.subf %0, %14 : vector<8x32xf32>
    %cst_8 = arith.constant 9.99999974E-6 : f32
    %16 = vector.broadcast %cst_8 : f32 to vector<8x1xf32>
    %17 = arith.addf %13, %16 : vector<8x1xf32>
    %18 = math.rsqrt %17 : vector<8x1xf32>
    %19 = vector.broadcast %18 : vector<8x1xf32> to vector<8x32xf32>
    %20 = arith.mulf %15, %19 : vector<8x32xf32>
    %21 = vector.broadcast %1 : vector<1x32xf32> to vector<8x32xf32>
    %22 = arith.mulf %20, %21 : vector<8x32xf32>
    %23 = vector.broadcast %2 : vector<1x32xf32> to vector<8x32xf32>
    %24 = arith.addf %22, %23 : vector<8x32xf32>
    %c0_9 = arith.constant 0 : index
    %c0_10 = arith.constant 0 : index
    %25 = vector.load %arg4[%c0_9, %c0_10] : memref<8x32xf32, #tpu.memory_space<vmem>>, vector<8x32xf32>
    tpu.vector_store %arg4[%c0_9, %c0_10], %24 {strides = array<i32>} : memref<8x32xf32, #tpu.memory_space<vmem>>, vector<8x32xf32>,
    return
  }
  func.func @transform_0(%arg0: i32) -> (i32, i32) {
    %c0_i32 = arith.constant 0 : i32
    %c0_i32_0 = arith.constant 0 : i32
    return %arg0, %c0_i32 : i32, i32
  }
  func.func @transform_1(%arg0: i32) -> (i32, i32) {
    %c0_i32 = arith.constant 0 : i32
    %c0_i32_0 = arith.constant 0 : i32
    %c0_i32_1 = arith.constant 0 : i32
    return %c0_i32, %c0_i32_0 : i32, i32
  }
  func.func @transform_2(%arg0: i32) -> (i32, i32) {
    %c0_i32 = arith.constant 0 : i32
    %c0_i32_0 = arith.constant 0 : i32
    %c0_i32_1 = arith.constant 0 : i32
    return %c0_i32, %c0_i32_0 : i32, i32
  }
  func.func @transform_3(%arg0: i32) -> (i32, i32) {
    %c0_i32 = arith.constant 0 : i32
    %c0_i32_0 = arith.constant 0 : i32
    return %arg0, %c0_i32 : i32, i32
  }
}

</mosaic_0001>

<llo_original>
// kernel: tpu_custom_call.1
$region0: #{tpu_custom_call.1}
  #allocation0 [shape = 'u32[]', space=smem, size = 0x4, offset = 0x4, fixed_abs, tag = 'smem constant byte address 0x4 - core index']
  #allocation1 [shape = 'u32[72,128]{1,0:T(1,128)}', space=vmem, size = 0x9000, scoped, tag = 'internal scratch']
  %s0 = inlined_call_operand.hbm [shape: f32[16,32], index: 0, kind: input, shape index: {}]
  %s1 = inlined_call_operand.hbm [shape: f32[1,32], index: 1, kind: input, shape index: {}]
  %s2 = inlined_call_operand.vmem [shape: f32[1,32], index: 2, kind: input, shape index: {}]
  %s3 = inlined_call_operand.hbm [shape: f32[16,32], index: 3, kind: output, shape index: {}]
  %s4 = sld [smem:[#allocation0]]
  $region53: #{tpu_custom_call.1} parent=0
    _
  %s6 = ssub.s32 1, %s4
  %s7 = scalar_select 0, %s6, %s4
  $region1: #{tpu_custom_call.1} parent=0
    #allocation2 [shape = 'u8[8192]{0}', space=vmem, size = 0x2000, scoped, tag = 'input window, operand 0']
    #allocation3 [shape = 's32[2]{0}', space=sflag, size = 0x8, scoped, tag = 'scoped memory for tpu_custom_call.1']
    #allocation4 [shape = 's32[2]{0}', space=sflag, size = 0x8, scoped, tag = 'scoped memory for tpu_custom_call.1']
    #allocation5 [shape = 'u8[512]{0}', space=vmem, size = 0x400, scoped, tag = 'input window, operand 1, single buffered']
    #allocation6 [shape = 's32[1]{0}', space=sflag, size = 0x4, scoped, tag = 'scoped memory for tpu_custom_call.1']
    #allocation7 [shape = 'u8[8192]{0}', space=vmem, size = 0x2000, scoped, tag = 'output window, operand 0']
    %8 = vsyncpa [#allocation3], 0
    %s9 = scalar_lea.sflag [#allocation3], 1
    %10 = vsyncpa %s9, 0
    %11 = vsyncpa [#allocation6], 0
    %12 = vsyncpa [#allocation4], 0
    %s13 = scalar_lea.sflag [#allocation4], 1
    %14 = vsyncpa %s13, 0
    loop: start=0, step=1, limit=4
    $region2: #{tpu_custom_call.1} parent=1 // loop_pre_header
      _
    $region3: #{tpu_custom_call.1} parent=1 // loop_header
      %s16 = sphi 0, %s20
      %p17 = scmp.ge.s32.totalorder %s16, 4
      %s26 = sphi 0, %s28
      %s29 = sphi 0, %s26
      %s30 = sphi 0, %s29
      %s46 = sphi 0, %s30
      %s50 = sphi 0, %s50
      %s52 = sphi 0, %s50
      %s53 = sphi 0, %s52
      %s67 = sphi 0, %s53
      %s71 = sphi 0, %s71
      %s73 = sphi 0, %s71
      %s74 = sphi 0, %s73
      %s88 = sphi 0, %s74
      %s94 = sphi 0, %s96
      %s97 = sphi 0, %s94
      %s98 = sphi 0, %s97
      %s114 = sphi 0, %s98
    $region4: #{tpu_custom_call.1} parent=1 // loop_header_branch
      %19 = sbr.rel (%p17) target = $region8
    $region5: #{tpu_custom_call.1} parent=1 // loop_body
      %s21 = ssub.s32 %s16, 1
      %s22 = ssub.s32 %s16, 2
      %s23 = sadd.s32 %s16, 1
      %s24 = ssub.s32 %s16, %s23
      %p25 = scmp.eq.s32.totalorder %s24, 0
      %s27 = sadd.s32 %s26, 1
      %s28 = scalar_select %p25, %s26, %s27
      %p31 = pneg %p25
      %p32 = scmp.eq.s32.totalorder %s16, 1
      %p33 = por %p31, %p32
      %p34 = scmp.ne.s32.totalorder %s26, %s29
      %p35 = scmp.eq.s32.totalorder %s16, 0
      %p36 = por %p34, %p35
      %p37 = scmp.ne.s32.totalorder %s26, %s29
      %p38 = scmp.eq.s32.totalorder %s21, 1
      %p39 = por %p37, %p38
      %p40 = scmp.ne.s32.totalorder %s29, %s30
      %p41 = scmp.eq.s32.totalorder %s21, 0
      %p42 = por %p40, %p41
      %p43 = scmp.ne.s32.totalorder %s29, %s30
      %p44 = scmp.eq.s32.totalorder %s22, 1
      %p45 = por %p43, %p44
      %p47 = scmp.ne.s32.totalorder %s30, %s46
      %p48 = scmp.eq.s32.totalorder %s22, 0
      %p49 = por %p47, %p48
      %s51 = sadd.s32 %s50, 1
      %p54 = scmp.eq.s32.totalorder %s16, 1
      %p55 = scmp.ne.s32.totalorder %s50, %s52
      %p56 = scmp.eq.s32.totalorder %s16, 0
      %p57 = por %p55, %p56
      %p58 = scmp.ne.s32.totalorder %s50, %s52
      %p59 = scmp.eq.s32.totalorder %s21, 1
      %p60 = por %p58, %p59
      %p61 = scmp.ne.s32.totalorder %s52, %s53
      %p62 = scmp.eq.s32.totalorder %s21, 0
      %p63 = por %p61, %p62
      %p64 = scmp.ne.s32.totalorder %s52, %s53
      %p65 = scmp.eq.s32.totalorder %s22, 1
      %p66 = por %p64, %p65
      %p68 = scmp.ne.s32.totalorder %s53, %s67
      %p69 = scmp.eq.s32.totalorder %s22, 0
      %p70 = por %p68, %p69
      %s72 = sadd.s32 %s71, 1
      %p75 = scmp.eq.s32.totalorder %s16, 1
      %p76 = scmp.ne.s32.totalorder %s71, %s73
      %p77 = scmp.eq.s32.totalorder %s16, 0
      %p78 = por %p76, %p77
      %p79 = scmp.ne.s32.totalorder %s71, %s73
      %p80 = scmp.eq.s32.totalorder %s21, 1
      %p81 = por %p79, %p80
      %p82 = scmp.ne.s32.totalorder %s73, %s74
      %p83 = scmp.eq.s32.totalorder %s21, 0
      %p84 = por %p82, %p83
      %p85 = scmp.ne.s32.totalorder %s73, %s74
      %p86 = scmp.eq.s32.totalorder %s22, 1
      %p87 = por %p85, %p86
      %p89 = scmp.ne.s32.totalorder %s74, %s88
      %p90 = scmp.eq.s32.totalorder %s22, 0
      %p91 = por %p89, %p90
      %s92 = ssub.s32 %s16, %s23
      %p93 = scmp.eq.s32.totalorder %s92, 0
      %s95 = sadd.s32 %s94, 1
      %s96 = scalar_select %p93, %s94, %s95
      %p99 = pneg %p93
      %p100 = scmp.eq.s32.totalorder %s16, 1
      %p101 = por %p99, %p100
      %p102 = scmp.ne.s32.totalorder %s94, %s97
      %p103 = scmp.eq.s32.totalorder %s16, 0
      %p104 = por %p102, %p103
      %p105 = scmp.ne.s32.totalorder %s94, %s97
      %p106 = scmp.eq.s32.totalorder %s21, 1
      %p107 = por %p105, %p106
      %p108 = scmp.ne.s32.totalorder %s97, %s98
      %p109 = scmp.eq.s32.totalorder %s21, 0
      %p110 = por %p108, %p109
      %p111 = scmp.ne.s32.totalorder %s97, %s98
      %p112 = scmp.eq.s32.totalorder %s22, 1
      %p113 = por %p111, %p112
      %p115 = scmp.ne.s32.totalorder %s98, %s114
      %p116 = scmp.eq.s32.totalorder %s22, 0
      %p117 = por %p115, %p116
      %p118 = scmp.le.s32.totalorder 1, %s16
      %p119 = scmp.lt.s32.totalorder %s16, 3
      %p120 = pnand %p118, %p119
      %p121 = pneg %p120
      // Predicated region
      $region9: #{tpu_custom_call.1} parent=5 // pred_check
        _
      $region10: #{tpu_custom_call.1} parent=5 // pred_check_branch
        %123 = sbr.rel (%p120) target = $region12
      $region11: #{tpu_custom_call.1} parent=5 // pred_region
        %s124 = ssub.s32 %s16, 1
        // Predicated region
        $region13: #{tpu_custom_call.1} parent=11 // pred_check
          %p125 = pneg %p63
        $region14: #{tpu_custom_call.1} parent=11 // pred_check_branch
          %127 = sbr.rel (%p125) target = $region16
        $region15: #{tpu_custom_call.1} parent=11 // pred_region
          %129 = vsyncadd [#allocation6], 0
          %s131 = sshll.u32 %s1, 4
          %s132 = int_to_ptr.hbm [resolvable:$true] %s131
          %s133 = sshll.u32 [#allocation5], 4
          %s134 = int_to_ptr.vmem [resolvable:$true] %s133
          %136 = dma.hbm_to_vmem [thread:$0]  %s132, 16, %s134, [#allocation6]
        $region16: #{tpu_custom_call.1} parent=11 // pred_fallthru
          _
        // Predicated region
        $region17: #{tpu_custom_call.1} parent=11 // pred_check
          %p137 = pneg %p84
        $region18: #{tpu_custom_call.1} parent=11 // pred_check_branch
          %139 = sbr.rel (%p137) target = $region20
        $region19: #{tpu_custom_call.1} parent=11 // pred_region
          _
        $region20: #{tpu_custom_call.1} parent=11 // pred_fallthru
          _
      $region12: #{tpu_custom_call.1} parent=5 // pred_fallthru
        _
      %p140 = scmp.lt.s32.totalorder %s16, 2
      // Predicated region
      $region21: #{tpu_custom_call.1} parent=5 // pred_check
        %p141 = pneg %p140
      $region22: #{tpu_custom_call.1} parent=5 // pred_check_branch
        %143 = sbr.rel (%p141) target = $region24
      $region23: #{tpu_custom_call.1} parent=5 // pred_region
        // Predicated region
        $region25: #{tpu_custom_call.1} parent=23 // pred_check
          %p144 = pneg %p36
        $region26: #{tpu_custom_call.1} parent=23 // pred_check_branch
          %146 = sbr.rel (%p144) target = $region28
        $region27: #{tpu_custom_call.1} parent=23 // pred_region
          %s147 = sand.u32 %s26, 1
          %s148 = scalar_lea.sflag [#allocation3], %s147
          %s149 = sand.u32 %s26, 1
          %s150 = smul.addr %s149, 8
          %s151 = scalar_lea.vmem [#allocation2], %s150
          %153 = vsyncadd %s148, 0
          %s154 = smul.addr %s16, 8
          %s155 = scalar_lea.hbm %s0, %s154
          %s157 = sshll.u32 %s155, 4
          %s158 = int_to_ptr.hbm [resolvable:$true] %s157
          %s159 = sshll.u32 %s151, 4
          %s160 = int_to_ptr.vmem [resolvable:$true] %s159
          %162 = dma.hbm_to_vmem [thread:$0]  %s158, 128, %s160, %s148
        $region28: #{tpu_custom_call.1} parent=23 // pred_fallthru
          _
      $region24: #{tpu_custom_call.1} parent=5 // pred_fallthru
        _
      %p163 = scmp.le.s32.totalorder 1, %s16
      %p164 = scmp.lt.s32.totalorder %s16, 3
      %p165 = pnand %p163, %p164
      %p166 = pneg %p165
      // Predicated region
      $region29: #{tpu_custom_call.1} parent=5 // pred_check
        _
      $region30: #{tpu_custom_call.1} parent=5 // pred_check_branch
        %168 = sbr.rel (%p165) target = $region32
      $region31: #{tpu_custom_call.1} parent=5 // pred_region
        %s169 = ssub.s32 %s16, 1
        %s170 = sand.u32 %s29, 1
        %s171 = scalar_lea.sflag [#allocation3], %s170
        %s172 = sand.u32 %s29, 1
        %s173 = smul.addr %s172, 8
        %s174 = scalar_lea.vmem [#allocation2], %s173
        // Predicated region
        $region33: #{tpu_custom_call.1} parent=31 // pred_check
          %p175 = pneg %p42
        $region34: #{tpu_custom_call.1} parent=31 // pred_check_branch
          %177 = sbr.rel (%p175) target = $region36
        $region35: #{tpu_custom_call.1} parent=31 // pred_region
          %179 = dma.done %s171, 128
        $region36: #{tpu_custom_call.1} parent=31 // pred_fallthru
          _
        // Predicated region
        $region37: #{tpu_custom_call.1} parent=31 // pred_check
          %p180 = pneg %p63
        $region38: #{tpu_custom_call.1} parent=31 // pred_check_branch
          %182 = sbr.rel (%p180) target = $region40
        $region39: #{tpu_custom_call.1} parent=31 // pred_region
          %184 = dma.done [#allocation6], 16
        $region40: #{tpu_custom_call.1} parent=31 // pred_fallthru
          _
        %s185 = sand.u32 %s29, 1
        %s186 = scalar_lea.sflag [#allocation3], %s185
        %s187 = sand.u32 %s29, 1
        %s188 = smul.addr %s187, 8
        %s189 = scalar_lea.vmem [#allocation2], %s188
        %p190 = pneg %p42
        %p191 = pneg %p39
        %p192 = pneg %p63
        %p193 = pneg %p60
        %p194 = pneg %p84
        %p195 = pneg %p81
        %p196 = pneg %p110
        %p197 = pneg %p107
        %s198 = sand.u32 %s97, 1
        %s199 = scalar_lea.sflag [#allocation4], %s198
        %s200 = sand.u32 %s97, 1
        %s201 = smul.addr %s200, 8
        %s202 = scalar_lea.vmem [#allocation7], %s201
        %v203 = vld [vmem:[%s174] sm:$0xff]
        %v204 = vld [vmem:[#allocation5] sm:$0x1]
        %v205 = vld [vmem:[%s2] sm:$0x1]
        %vm206 = vcmask 261120
        %v207 = vsel %vm206, %v203, 0.0
        %208 = vadd.xlane.f32.xlu0 %v207
        %v209 = vpop.xlane.xlu0 %208
        %v210 = vrcp.pop 32.0
        %v211 = vmul.f32 32.0, %v210
        %v212 = vsub.f32 1.0, %v211
        %v213 = vmul.f32 %v210, %v212
        %v214 = vadd.f32 %v210, %v213
        %vm215 = vweird.f32 %v210
        %v216 = vsel %vm215, %v210, %v214
        %v217 = vmul.f32 %v209, %v216
        %v218 = vsub.f32 %v203, %v217
        %v219 = vmul.f32 %v218, %v218
        %v220 = vsel %vm206, %v219, 0.0
        %221 = vadd.xlane.f32.xlu0 %v220
        %v222 = vpop.xlane.xlu0 %221
        %v223 = vmul.f32 %v222, %v216
        %v224 = vadd.f32 %v223, 1e-05
        %v225 = vrsqrt.pop %v224
        %v226 = vmul.f32 %v225, %v224
        %v227 = vmul.f32 %v226, %v225
        %v228 = vmul.f32 0.5, %v227
        %v229 = vsub.f32 1.5, %v228
        %v230 = vmul.f32 %v225, %v229
        %vm231 = vweird.f32 %v224
        %vm232 = vweird.f32 %v225
        %vm233 = vmor %vm231, %vm232
        %v234 = vsel %vm233, %v225, %v230
        %v235 = vmul.f32 %v218, %v234
        %v237 = vperm.slane %v204, 0
        %v239 = vmul.f32 %v235, %v237
        %v241 = vperm.slane %v205, 0
        %v243 = vadd.f32 %v239, %v241
        %244 = vst.msk [vmem:[%s202] sm:$0xff] %vm206, %v243
        %s245 = sand.u32 %s97, 1
        %s246 = scalar_lea.sflag [#allocation4], %s245
        %s247 = sand.u32 %s97, 1
        %s248 = smul.addr %s247, 8
        %s249 = scalar_lea.vmem [#allocation7], %s248
        // Predicated region
        $region41: #{tpu_custom_call.1} parent=31 // pred_check
          %p250 = pneg %p107
        $region42: #{tpu_custom_call.1} parent=31 // pred_check_branch
          %252 = sbr.rel (%p250) target = $region44
        $region43: #{tpu_custom_call.1} parent=31 // pred_region
          %254 = vsyncadd %s246, 0
          %s255 = smul.addr %s21, 8
          %s256 = scalar_lea.hbm %s3, %s255
          %s258 = sshll.u32 %s249, 4
          %s259 = int_to_ptr.vmem [resolvable:$true] %s258
          %s260 = sshll.u32 %s256, 4
          %s261 = int_to_ptr.hbm [resolvable:$true] %s260
          %263 = dma.vmem_to_hbm [thread:$0]  %s259, 128, %s261, %s246
        $region44: #{tpu_custom_call.1} parent=31 // pred_fallthru
          _
      $region32: #{tpu_custom_call.1} parent=5 // pred_fallthru
        _
      %p264 = scmp.le.s32.totalorder 2, %s16
      // Predicated region
      $region45: #{tpu_custom_call.1} parent=5 // pred_check
        %p265 = pneg %p264
      $region46: #{tpu_custom_call.1} parent=5 // pred_check_branch
        %267 = sbr.rel (%p265) target = $region48
      $region47: #{tpu_custom_call.1} parent=5 // pred_region
        %s268 = ssub.s32 %s16, 2
        // Predicated region
        $region49: #{tpu_custom_call.1} parent=47 // pred_check
          %p269 = pneg %p113
        $region50: #{tpu_custom_call.1} parent=47 // pred_check_branch
          %271 = sbr.rel (%p269) target = $region52
        $region51: #{tpu_custom_call.1} parent=47 // pred_region
          %s272 = sand.u32 %s98, 1
          %s273 = scalar_lea.sflag [#allocation4], %s272
          %s274 = sand.u32 %s98, 1
          %s275 = smul.addr %s274, 8
          %s276 = scalar_lea.vmem [#allocation7], %s275
          %278 = dma.done %s273, 128
        $region52: #{tpu_custom_call.1} parent=47 // pred_fallthru
          _
      $region48: #{tpu_custom_call.1} parent=5 // pred_fallthru
        _
    $region6: #{tpu_custom_call.1} parent=1 // loop_footer
      %s20 = sadd.s32 1, %s16
    $region7: #{tpu_custom_call.1} parent=1 // loop_footer_branch
      %15 = sbr.rel target = $region3
    $region8: #{tpu_custom_call.1} parent=1 // loop_exit
      _
    %279 = vsyncpa [#allocation3], 1
    %s280 = scalar_lea.sflag [#allocation3], 1
    %281 = vsyncpa %s280, 1
    %282 = vsyncpa [#allocation6], 1
    %283 = vsyncpa [#allocation4], 1
    %s284 = scalar_lea.sflag [#allocation4], 1
    %285 = vsyncpa %s284, 1

</llo_original>
